<compile_context>
chip_gen: v7x
topology: tpu7x:2x2x1
jax: 0.10.0
libtpu: 0.0.40
codegen_flags: <defaults>
</compile_context>

<pallas_src>
import functools

import jax
import jax.numpy as jnp
from jax import lax
from jax.experimental import pallas as pl
from jax.experimental.pallas import tpu as pltpu

L2_EPS = 1e-12   # matches F.normalize(p=2, dim=-1) default eps


def _l2_normalize_f32(x):
    # x / max(||x||_2, eps)  ==  x * rsqrt(max(||x||^2, eps^2))  (rsqrt -> EUP/XLA)
    ssq = jnp.sum(x * x, axis=-1, keepdims=True)
    return x * lax.rsqrt(jnp.maximum(ssq, L2_EPS * L2_EPS))


def _flash_attn_kernel(q_ref, k_ref, v_ref, o_ref, m_sc, l_sc, acc_sc, *, approx_recip):
    """One (batch, head, q-tile, kv-tile) grid step of online-softmax attention.

    q_ref: (1, 1, TQ, hd)  -- already L2-normalized and pre-scaled by g_scale
    k_ref: (1, 1, TK, hd)  -- already L2-normalized
    v_ref: (1, 1, TK, hd)
    o_ref: (1, TQ, hd) lane-dense slice of (B, N, D), or (1, 1, TQ, hd) fallback
    scratch: m_sc / l_sc (TQ, 1) f32, acc_sc (TQ, hd) f32
    """
    ki = pl.program_id(3)
    nk = pl.num_programs(3)

    # ---- once per (batch, head, q-tile): reset flash state ----
    @pl.when(ki == 0)
    def _init():
        m_sc[...] = jnp.full(m_sc.shape, -1e30, dtype=m_sc.dtype)   # finite: no inf-inf
        l_sc[...] = jnp.zeros(l_sc.shape, l_sc.dtype)
        acc_sc[...] = jnp.zeros(acc_sc.shape, acc_sc.dtype)

    q = q_ref[0, 0]                    # (TQ, hd)  compute dtype
    k = k_ref[0, 0]                    # (TK, hd)
    v = v_ref[0, 0]                    # (TK, hd)

    # scores: contract last dims directly (no materialized k^T); g already folded in q
    s = lax.dot_general(q, k, dimension_numbers=(((1,), (1,)), ((), ())),
                        preferred_element_type=jnp.float32)          # (TQ, TK) f32

    m_prev = m_sc[...]                                                # (TQ, 1)
    m_new = jnp.maximum(m_prev, jnp.max(s, axis=-1, keepdims=True))
    alpha = jnp.exp(m_prev - m_new)
    p = jnp.exp(s - m_new)                                            # (TQ, TK)
    l_sc[...] = alpha * l_sc[...] + jnp.sum(p, axis=-1, keepdims=True)
    acc_sc[...] = alpha * acc_sc[...] + jnp.dot(
        p.astype(v.dtype), v, preferred_element_type=jnp.float32)
    m_sc[...] = m_new

    # ---- last KV tile: normalize and emit this q-tile ----
    @pl.when(ki == nk - 1)
    def _finalize():
        inv_l = pl.reciprocal(l_sc[...], approx=approx_recip)         # EUP
        o_ref[...] = (acc_sc[...] * inv_l).astype(o_ref.dtype).reshape(o_ref.shape)


def cross_attention(x, t_embed, params, num_heads, *, tq=None, tk=None,
                    compute_dtype=jnp.bfloat16):
    """Forward of the CrossAttention module (eval mode, no masks, need_weights=False)."""
    B, N, D = x.shape
    assert t_embed.shape == (B, N, D)
    assert D % num_heads == 0, "embed_dim is indivisible by num_heads"
    hd = D // num_heads

    if tq is None:
        tq = min(128, N)
    if tk is None:
        # 128 is safe on every generation; pass tk=256 on v6e/v7x (2x256^2 MXU) to
        # widen the score tile / deepen the PV contraction.
        tk = min(128, N)
    assert N % tq == 0 and N % tk == 0, "seq_len must be divisible by tile sizes"

    cdt = jnp.dtype(compute_dtype)
    out_dtype = x.dtype
    cw = cdt.itemsize
    ow = jnp.dtype(out_dtype).itemsize
    # Projection precision: HIGHEST only for the f32 accuracy path; fast otherwise.
    prec = (lax.Precision.HIGHEST if cdt == jnp.dtype(jnp.float32)
            else lax.Precision.DEFAULT)

    def project(inp, w):                                   # -> (B, H, N, hd) f32
        y = jnp.einsum("bnd,de->bne", inp.astype(compute_dtype),
                       w.astype(compute_dtype), precision=prec,
                       preferred_element_type=jnp.float32)
        return y.reshape(B, N, num_heads, hd).transpose(0, 2, 1, 3)

    # One-shot projections + qk-norm in XLA (no per-q-tile redundancy); g_scale folded
    # into q so the kernel never multiplies the (TQ,TK) score tile on the VPU.
    g = params["g_scale"].reshape(()).astype(jnp.float32)
    q = (g * _l2_normalize_f32(project(t_embed, params["wq"]))).astype(compute_dtype)
    k = _l2_normalize_f32(project(x, params["wk"])).astype(compute_dtype)
    v = project(x, params["wv"]).astype(compute_dtype)

    grid = (B, num_heads, N // tq, N // tk)

    # Lane-dense direct (B, N, D) output when each head's hd columns are 128-aligned.
    lane_dense = (hd % 128 == 0) or (num_heads == 1)
    if lane_dense:
        out_shape = jax.ShapeDtypeStruct((B, N, D), out_dtype)
        out_spec = pl.BlockSpec((1, tq, hd), lambda b, h, qi, ki: (b, qi, h))
    else:
        out_shape = jax.ShapeDtypeStruct((B, num_heads, N, hd), out_dtype)
        out_spec = pl.BlockSpec((1, 1, tq, hd), lambda b, h, qi, ki: (b, h, qi, 0))

    # VMEM budget (double-buffered tiles) + headroom; cap at 48 MiB for v7x headroom.
    vmem_bytes = (
        2 * tq * hd * cw                    # q tile
        + 2 * 2 * tk * hd * cw              # k / v tiles
        + 2 * tq * max(hd, 128) * ow        # output tile
        + tq * hd * 4                       # f32 accumulator scratch
        + 2 * tq * 128 * 4                  # m / l scratch (lane padded)
        + (2 << 20)                         # headroom
    )
    vmem_limit = int(min(48 << 20, max(vmem_bytes, 16 << 20)))

    cost = pl.CostEstimate(
        flops=int(4 * B * N * N * D),                         # QK^T + PV
        transcendentals=int(B * num_heads * N * N),           # exp on score tiles
        bytes_accessed=int(B * N * D * cw                     # q streamed once
                           + 2 * (N // tq) * B * N * D * cw   # k/v re-read per q-tile
                           + B * N * D * ow),                 # output
    )

    kernel = functools.partial(_flash_attn_kernel,
                               approx_recip=(cdt != jnp.dtype(jnp.float32)))

    out = pl.pallas_call(
        kernel,
        out_shape=out_shape,
        grid_spec=pltpu.PrefetchScalarGridSpec(
            num_scalar_prefetch=0,
            grid=grid,
            in_specs=[
                pl.BlockSpec((1, 1, tq, hd), lambda b, h, qi, ki: (b, h, qi, 0)),  # q
                pl.BlockSpec((1, 1, tk, hd), lambda b, h, qi, ki: (b, h, ki, 0)),  # k
                pl.BlockSpec((1, 1, tk, hd), lambda b, h, qi, ki: (b, h, ki, 0)),  # v
            ],
            out_specs=out_spec,
            scratch_shapes=[
                pltpu.VMEM((tq, 1), jnp.float32),     # running max m
                pltpu.VMEM((tq, 1), jnp.float32),     # running sum l
                pltpu.VMEM((tq, hd), jnp.float32),    # output accumulator
            ],
        ),
        compiler_params=pltpu.CompilerParams(
            dimension_semantics=("parallel", "parallel", "parallel", "arbitrary"),
            vmem_limit_bytes=vmem_limit,
        ),
        cost_estimate=cost,
    )(q, k, v)

    if not lane_dense:
        out = out.transpose(0, 2, 1, 3).reshape(B, N, D)
    return out, None   # need_weights=False path of the module


def reference_cross_attention(x, t_embed, params, num_heads):
    """Pure-JAX mirror of the PyTorch forward (eval, no masks), high precision."""
    B, N, D = x.shape
    hd = D // num_heads
    prec = lax.Precision.HIGHEST
    q = jnp.einsum("bnd,de->bne", t_embed, params["wq"], precision=prec)
    k = jnp.einsum("bnd,de->bne", x, params["wk"], precision=prec)
    v = jnp.einsum("bnd,de->bne", x, params["wv"], precision=prec)

    def heads(z):
        return z.reshape(B, N, num_heads, hd).transpose(0, 2, 1, 3)

    q, k, v = heads(q), heads(k), heads(v)
    qn = q / jnp.maximum(jnp.linalg.norm(q, axis=-1, keepdims=True), L2_EPS)
    kn = k / jnp.maximum(jnp.linalg.norm(k, axis=-1, keepdims=True), L2_EPS)
    s = params["g_scale"][0] * jnp.einsum("bhqe,bhke->bhqk", qn, kn, precision=prec)
    p = jax.nn.softmax(s, axis=-1)
    o = jnp.einsum("bhqk,bhke->bhqe", p, v, precision=prec)
    return o.transpose(0, 2, 1, 3).reshape(B, N, D)


if __name__ == "__main__":
    # Small but MXU/lane-friendly shapes: head_dim = 128 (lane-aligned), D multiple of 128.
    B, N, D, num_heads = 2, 128, 256, 2
    hd = D // num_heads

    key = jax.random.PRNGKey(0)
    kx, kt, kq, kk, kv = jax.random.split(key, 5)
    wscale = D ** -0.5
    params = {
        "wq": jax.random.normal(kq, (D, D), jnp.float32) * wscale,    # (in, out) = W_torch.T
        "wk": jax.random.normal(kk, (D, D), jnp.float32) * wscale,
        "wv": jax.random.normal(kv, (D, D), jnp.float32) * wscale,
        # module init: g_scale = 1 / d_k = head_dim ** 0.5
        "g_scale": jnp.full((1,), float(hd) ** 0.5, jnp.float32),
    }
    x = jax.random.normal(kx, (B, N, D), jnp.float32)
    t_embed = jax.random.normal(kt, (B, N, D), jnp.float32)

    ref = reference_cross_attention(x, t_embed, params, num_heads)

    # f32 compute path: tight numerical check (exercises 2 q-tiles x 2 kv-tiles).
    out_f32, _ = cross_attention(x, t_embed, params, num_heads,
                                 tq=64, tk=64, compute_dtype=jnp.float32)
    out_f32 = jax.block_until_ready(out_f32)
    assert out_f32.shape == (B, N, D)
    assert jnp.allclose(out_f32, ref, atol=1e-3, rtol=1e-3), "f32 kernel mismatch vs reference"

    # bf16 compute path (performance config, default tiles): loose sanity check.
    out_bf16, _ = cross_attention(x, t_embed, params, num_heads,
                                  compute_dtype=jnp.bfloat16)
    out_bf16 = jax.block_until_ready(out_bf16)
    err = jnp.abs(out_bf16.astype(jnp.float32) - ref)
    assert float(jnp.max(err)) < 0.2 and float(jnp.mean(err)) < 0.02, \
        "bf16 kernel drifted too far from reference"

    print("KERNEL_OK")
</pallas_src>

<mosaic_0001>
module attributes {stable_mosaic.version = 11 : i64} {
  func.func @_flash_attn_kernel(%arg0: i32, %arg1: i32, %arg2: i32, %arg3: i32, %arg4: memref<1x1x64x128xf32, #tpu.memory_space<vmem>>, %arg5: memref<1x1x64x128xf32, #tpu.memory_space<vmem>>, %arg6: memref<1x1x64x128xf32, #tpu.memory_space<vmem>>, %arg7: memref<1x64x128xf32, #tpu.memory_space<vmem>>, %arg8: memref<64x1xf32, #tpu.memory_space<vmem>>, %arg9: memref<64x1xf32, #tpu.memory_space<vmem>>, %arg10: memref<64x128xf32, #tpu.memory_space<vmem>>) attributes {dimension_semantics = [#tpu.dimension_semantics<parallel>, #tpu.dimension_semantics<parallel>, #tpu.dimension_semantics<parallel>, #tpu.dimension_semantics<arbitrary>], iteration_bounds = array<i64: 2, 2, 2, 2>, scalar_prefetch = 0 : i64, scratch_operands = 3 : i64, tpu.core_type = #tpu.core_type<tc>, window_params = [{transform_indices = @transform_0, window_bounds = array<i64: 1, 1, 64, 128>}, {transform_indices = @transform_1, window_bounds = array<i64: 1, 1, 64, 128>}, {transform_indices = @transform_2, window_bounds = array<i64: 1, 1, 64, 128>}, {transform_indices = @transform_3, window_bounds = array<i64: 1, 64, 128>}]} {
    %c0_i32 = arith.constant 0 : i32
    %0 = arith.cmpi eq, %arg3, %c0_i32 : i32
    %1 = arith.extui %0 : i1 to i32
    %c0_i32_0 = arith.constant 0 : i32
    %2 = arith.cmpi ne, %1, %c0_i32_0 : i32
    scf.if %2 {
      %cst_28 = arith.constant -1.000000e+30 : f32
      %35 = vector.broadcast %cst_28 : f32 to vector<64x1xf32>
      %c0_29 = arith.constant 0 : index
      %c0_30 = arith.constant 0 : index
      %36 = vector.load %arg8[%c0_29, %c0_30] : memref<64x1xf32, #tpu.memory_space<vmem>>, vector<64x1xf32>
      tpu.vector_store %arg8[%c0_29, %c0_30], %35 {strides = array<i32>} : memref<64x1xf32, #tpu.memory_space<vmem>>, vector<64x1xf32>,
      %cst_31 = arith.constant 0.000000e+00 : f32
      %37 = vector.broadcast %cst_31 : f32 to vector<64x1xf32>
      %c0_32 = arith.constant 0 : index
      %c0_33 = arith.constant 0 : index
      %38 = vector.load %arg9[%c0_32, %c0_33] : memref<64x1xf32, #tpu.memory_space<vmem>>, vector<64x1xf32>
      tpu.vector_store %arg9[%c0_32, %c0_33], %37 {strides = array<i32>} : memref<64x1xf32, #tpu.memory_space<vmem>>, vector<64x1xf32>,
      %cst_34 = arith.constant 0.000000e+00 : f32
      %39 = vector.broadcast %cst_34 : f32 to vector<64x128xf32>
      %c0_35 = arith.constant 0 : index
      %c0_36 = arith.constant 0 : index
      %40 = vector.load %arg10[%c0_35, %c0_36] : memref<64x128xf32, #tpu.memory_space<vmem>>, vector<64x128xf32>
      tpu.vector_store %arg10[%c0_35, %c0_36], %39 {strides = array<i32>} : memref<64x128xf32, #tpu.memory_space<vmem>>, vector<64x128xf32>,
    } else {
    }
    %c0 = arith.constant 0 : index
    %c0_1 = arith.constant 0 : index
    %c0_2 = arith.constant 0 : index
    %c0_3 = arith.constant 0 : index
    %3 = vector.load %arg4[%c0, %c0_1, %c0_2, %c0_3] : memref<1x1x64x128xf32, #tpu.memory_space<vmem>>, vector<1x1x64x128xf32>
    %4 = vector.shape_cast %3 : vector<1x1x64x128xf32> to vector<64x128xf32>
    %c0_4 = arith.constant 0 : index
    %c0_5 = arith.constant 0 : index
    %c0_6 = arith.constant 0 : index
    %c0_7 = arith.constant 0 : index
    %5 = vector.load %arg5[%c0_4, %c0_5, %c0_6, %c0_7] : memref<1x1x64x128xf32, #tpu.memory_space<vmem>>, vector<1x1x64x128xf32>
    %6 = vector.shape_cast %5 : vector<1x1x64x128xf32> to vector<64x128xf32>
    %c0_8 = arith.constant 0 : index
    %c0_9 = arith.constant 0 : index
    %c0_10 = arith.constant 0 : index
    %c0_11 = arith.constant 0 : index
    %7 = vector.load %arg6[%c0_8, %c0_9, %c0_10, %c0_11] : memref<1x1x64x128xf32, #tpu.memory_space<vmem>>, vector<1x1x64x128xf32>
    %8 = vector.shape_cast %7 : vector<1x1x64x128xf32> to vector<64x128xf32>
    %cst = arith.constant dense<0.000000e+00> : vector<64x64xf32>
    %9 = tpu.matmul %4, %6, %cst {dimension_numbers = #tpu.dot_dimension_numbers<[1], [1], [0], [0], [0, 0, 1, 0], [], []>} : vector<64x128xf32>, vector<64x128xf32>, vector<64x64xf32> -> vector<64x64xf32>
    %c0_12 = arith.constant 0 : index
    %c0_13 = arith.constant 0 : index
    %10 = vector.load %arg8[%c0_12, %c0_13] : memref<64x1xf32, #tpu.memory_space<vmem>>, vector<64x1xf32>
    %cst_14 = arith.constant dense<0xFF800000> : vector<64xf32>
    %11 = vector.multi_reduction <maximumf>, %9, %cst_14 [1] : vector<64x64xf32> to vector<64xf32>
    %12 = vector.shape_cast %11 : vector<64xf32> to vector<64x1xf32>
    %13 = arith.maximumf %10, %12 : vector<64x1xf32>
    %14 = arith.subf %10, %13 : vector<64x1xf32>
    %15 = math.exp %14 : vector<64x1xf32>
    %16 = vector.broadcast %13 : vector<64x1xf32> to vector<64x64xf32>
    %17 = arith.subf %9, %16 : vector<64x64xf32>
    %18 = math.exp %17 : vector<64x64xf32>
    %c0_15 = arith.constant 0 : index
    %c0_16 = arith.constant 0 : index
    %19 = vector.load %arg9[%c0_15, %c0_16] : memref<64x1xf32, #tpu.memory_space<vmem>>, vector<64x1xf32>
    %20 = arith.mulf %15, %19 : vector<64x1xf32>
    %cst_17 = arith.constant dense<0.000000e+00> : vector<64xf32>
    %21 = vector.multi_reduction <add>, %18, %cst_17 [1] : vector<64x64xf32> to vector<64xf32>
    %22 = vector.shape_cast %21 : vector<64xf32> to vector<64x1xf32>
    %23 = arith.addf %20, %22 : vector<64x1xf32>
    %c0_18 = arith.constant 0 : index
    %c0_19 = arith.constant 0 : index
    %24 = vector.load %arg9[%c0_18, %c0_19] : memref<64x1xf32, #tpu.memory_space<vmem>>, vector<64x1xf32>
    tpu.vector_store %arg9[%c0_18, %c0_19], %23 {strides = array<i32>} : memref<64x1xf32, #tpu.memory_space<vmem>>, vector<64x1xf32>,
    %c0_20 = arith.constant 0 : index
    %c0_21 = arith.constant 0 : index
    %25 = vector.load %arg10[%c0_20, %c0_21] : memref<64x128xf32, #tpu.memory_space<vmem>>, vector<64x128xf32>
    %26 = vector.broadcast %15 : vector<64x1xf32> to vector<64x128xf32>
    %27 = arith.mulf %26, %25 : vector<64x128xf32>
    %cst_22 = arith.constant dense<0.000000e+00> : vector<64x128xf32>
    %28 = tpu.matmul %18, %8, %cst_22 {dimension_numbers = #tpu.dot_dimension_numbers<[1], [0], [0], [1], [0, 0, 1, 1], [], []>} : vector<64x64xf32>, vector<64x128xf32>, vector<64x128xf32> -> vector<64x128xf32>
    %29 = arith.addf %27, %28 : vector<64x128xf32>
    %c0_23 = arith.constant 0 : index
    %c0_24 = arith.constant 0 : index
    %30 = vector.load %arg10[%c0_23, %c0_24] : memref<64x128xf32, #tpu.memory_space<vmem>>, vector<64x128xf32>
    tpu.vector_store %arg10[%c0_23, %c0_24], %29 {strides = array<i32>} : memref<64x128xf32, #tpu.memory_space<vmem>>, vector<64x128xf32>,
    %c0_25 = arith.constant 0 : index
    %c0_26 = arith.constant 0 : index
    %31 = vector.load %arg8[%c0_25, %c0_26] : memref<64x1xf32, #tpu.memory_space<vmem>>, vector<64x1xf32>
    tpu.vector_store %arg8[%c0_25, %c0_26], %13 {strides = array<i32>} : memref<64x1xf32, #tpu.memory_space<vmem>>, vector<64x1xf32>,
    %c1_i32 = arith.constant 1 : i32
    %32 = arith.cmpi eq, %arg3, %c1_i32 : i32
    %33 = arith.extui %32 : i1 to i32
    %c0_i32_27 = arith.constant 0 : i32
    %34 = arith.cmpi ne, %33, %c0_i32_27 : i32
    scf.if %34 {
      %c0_28 = arith.constant 0 : index
      %c0_29 = arith.constant 0 : index
      %35 = vector.load %arg9[%c0_28, %c0_29] : memref<64x1xf32, #tpu.memory_space<vmem>>, vector<64x1xf32>
      %36 = tpu.reciprocal %35 : vector<64x1xf32> -> vector<64x1xf32>
      %c0_30 = arith.constant 0 : index
      %c0_31 = arith.constant 0 : index
      %37 = vector.load %arg10[%c0_30, %c0_31] : memref<64x128xf32, #tpu.memory_space<vmem>>, vector<64x128xf32>
      %38 = vector.broadcast %36 : vector<64x1xf32> to vector<64x128xf32>
      %39 = arith.mulf %37, %38 : vector<64x128xf32>
      %40 = vector.shape_cast %39 : vector<64x128xf32> to vector<1x64x128xf32>
      %c0_32 = arith.constant 0 : index
      %c0_33 = arith.constant 0 : index
      %c0_34 = arith.constant 0 : index
      %41 = vector.load %arg7[%c0_32, %c0_33, %c0_34] : memref<1x64x128xf32, #tpu.memory_space<vmem>>, vector<1x64x128xf32>
      tpu.vector_store %arg7[%c0_32, %c0_33, %c0_34], %40 {strides = array<i32>} : memref<1x64x128xf32, #tpu.memory_space<vmem>>, vector<1x64x128xf32>,
    } else {
    }
    return
  }
  func.func @transform_0(%arg0: i32, %arg1: i32, %arg2: i32, %arg3: i32) -> (i32, i32, i32, i32) {
    %c0_i32 = arith.constant 0 : i32
    %c0_i32_0 = arith.constant 0 : i32
    return %arg0, %arg1, %arg2, %c0_i32 : i32, i32, i32, i32
  }
  func.func @transform_1(%arg0: i32, %arg1: i32, %arg2: i32, %arg3: i32) -> (i32, i32, i32, i32) {
    %c0_i32 = arith.constant 0 : i32
    %c0_i32_0 = arith.constant 0 : i32
    return %arg0, %arg1, %arg3, %c0_i32 : i32, i32, i32, i32
  }
  func.func @transform_2(%arg0: i32, %arg1: i32, %arg2: i32, %arg3: i32) -> (i32, i32, i32, i32) {
    %c0_i32 = arith.constant 0 : i32
    %c0_i32_0 = arith.constant 0 : i32
    return %arg0, %arg1, %arg3, %c0_i32 : i32, i32, i32, i32
  }
  func.func @transform_3(%arg0: i32, %arg1: i32, %arg2: i32, %arg3: i32) -> (i32, i32, i32) {
    %c0_i32 = arith.constant 0 : i32
    return %arg0, %arg2, %arg1 : i32, i32, i32
  }
}

</mosaic_0001>

<llo_original>
// kernel: tpu_custom_call.1
$region0: #{tpu_custom_call.1}
  #allocation0 [shape = 'u32[]', space=smem, size = 0x4, offset = 0x4, fixed_abs, tag = 'smem constant byte address 0x4 - core index']
  #allocation1 [shape = 'u32[144,128]{1,0:T(1,128)}', space=vmem, size = 0x12000, scoped, tag = 'internal scratch']
  #allocation2 [shape = 'f32[64,1]{1,0:T(8,128)}', space=vmem, size = 0x8000, scoped, tag = 'scratch operand']
  #allocation3 [shape = 'f32[64,1]{1,0:T(8,128)}', space=vmem, size = 0x8000, scoped, tag = 'scratch operand']
  #allocation4 [shape = 'f32[64,128]{1,0:T(8,128)}', space=vmem, size = 0x8000, scoped, tag = 'scratch operand']
  %s0 = inlined_call_operand.hbm [shape: f32[2,2,128,128], index: 0, kind: input, shape index: {}]
  %s1 = inlined_call_operand.hbm [shape: f32[2,2,128,128], index: 1, kind: input, shape index: {}]
  %s2 = inlined_call_operand.hbm [shape: f32[2,2,128,128], index: 2, kind: input, shape index: {}]
  %s3 = inlined_call_operand.hbm [shape: f32[2,128,256], index: 3, kind: output, shape index: {}]
  %s4 = sld [smem:[#allocation0]]
  $region65: #{tpu_custom_call.1} parent=0
    _
  %s6 = ssub.s32 1, %s4
  %s7 = scalar_select 0, %s6, %s4
  $region1: #{tpu_custom_call.1} parent=0
    #allocation5 [shape = 'u8[65536]{0}', space=vmem, size = 0x10000, scoped, tag = 'input window, operand 0']
    #allocation6 [shape = 's32[2]{0}', space=sflag, size = 0x8, scoped, tag = 'scoped memory for tpu_custom_call.1']
    #allocation7 [shape = 's32[2]{0}', space=sflag, size = 0x8, scoped, tag = 'scoped memory for tpu_custom_call.1']
    #allocation8 [shape = 'u8[65536]{0}', space=vmem, size = 0x10000, scoped, tag = 'input window, operand 1']
    #allocation9 [shape = 's32[2]{0}', space=sflag, size = 0x8, scoped, tag = 'scoped memory for tpu_custom_call.1']
    #allocation10 [shape = 'u8[65536]{0}', space=vmem, size = 0x10000, scoped, tag = 'input window, operand 2']
    #allocation11 [shape = 'u8[65536]{0}', space=vmem, size = 0x10000, scoped, tag = 'output window, operand 0']
    %8 = vsyncpa [#allocation6], 0
    %s9 = scalar_lea.sflag [#allocation6], 1
    %10 = vsyncpa %s9, 0
    %11 = vsyncpa [#allocation9], 0
    %s12 = scalar_lea.sflag [#allocation9], 1
    %13 = vsyncpa %s12, 0
    %14 = vsyncpa [#allocation7], 0
    %s15 = scalar_lea.sflag [#allocation7], 1
    %16 = vsyncpa %s15, 0
    loop: start=0, step=1, limit=18
    $region2: #{tpu_custom_call.1} parent=1 // loop_pre_header
      _
    $region3: #{tpu_custom_call.1} parent=1 // loop_header
      %s18 = sphi 0, %s22
      %p19 = scmp.ge.s32.totalorder %s18, 18
      %s25 = sphi 0, %s51
      %s26 = sphi 0, %s47
      %s27 = sphi 0, %s43
      %s28 = sphi 0, %s39
      %s29 = sphi 0, %s25
      %s30 = sphi 0, %s26
      %s31 = sphi 0, %s27
      %s32 = sphi 0, %s28
      %s33 = sphi 0, %s29
      %s34 = sphi 0, %s30
      %s35 = sphi 0, %s31
      %s36 = sphi 0, %s32
      %s58 = sphi 0, %s60
      %s61 = sphi 0, %s58
      %s62 = sphi 0, %s61
      %s78 = sphi 0, %s62
      %s88 = sphi 0, %s90
      %s91 = sphi 0, %s88
      %s92 = sphi 0, %s91
      %s108 = sphi 0, %s92
      %s118 = sphi 0, %s120
      %s121 = sphi 0, %s118
      %s122 = sphi 0, %s121
      %s138 = sphi 0, %s122
      %s148 = sphi 0, %s150
      %s151 = sphi 0, %s148
      %s152 = sphi 0, %s151
      %s168 = sphi 0, %s152
    $region4: #{tpu_custom_call.1} parent=1 // loop_header_branch
      %21 = sbr.rel (%p19) target = $region8
    $region5: #{tpu_custom_call.1} parent=1 // loop_body
      %s23 = ssub.s32 %s18, 1
      %s24 = ssub.s32 %s18, 2
      %s37 = sadd.s32 1, %s28
      %p38 = scmp.ge.s32.totalorder %s37, 2
      %s39 = scalar_select %p38, 0, %s37
      %s40 = sadd.s32 1, %s27
      %s41 = scalar_select %p38, %s40, %s27
      %p42 = scmp.ge.s32.totalorder %s41, 2
      %s43 = scalar_select %p42, 0, %s41
      %s44 = sadd.s32 1, %s26
      %s45 = scalar_select %p42, %s44, %s26
      %p46 = scmp.ge.s32.totalorder %s45, 2
      %s47 = scalar_select %p46, 0, %s45
      %s48 = sadd.s32 1, %s25
      %s49 = scalar_select %p46, %s48, %s25
      %p50 = scmp.ge.s32.totalorder %s49, 2
      %s51 = scalar_select %p50, 0, %s49
      %s52 = ssub.s32 %s25, %s51
      %s53 = ssub.s32 %s26, %s47
      %s54 = sor.u32 %s52, %s53
      %s55 = ssub.s32 %s27, %s43
      %s56 = sor.u32 %s54, %s55
      %p57 = scmp.eq.s32.totalorder %s56, 0
      %s59 = sadd.s32 %s58, 1
      %s60 = scalar_select %p57, %s58, %s59
      %p63 = pneg %p57
      %p64 = scmp.eq.s32.totalorder %s18, 15
      %p65 = por %p63, %p64
      %p66 = scmp.ne.s32.totalorder %s58, %s61
      %p67 = scmp.eq.s32.totalorder %s18, 0
      %p68 = por %p66, %p67
      %p69 = scmp.ne.s32.totalorder %s58, %s61
      %p70 = scmp.eq.s32.totalorder %s23, 15
      %p71 = por %p69, %p70
      %p72 = scmp.ne.s32.totalorder %s61, %s62
      %p73 = scmp.eq.s32.totalorder %s23, 0
      %p74 = por %p72, %p73
      %p75 = scmp.ne.s32.totalorder %s61, %s62
      %p76 = scmp.eq.s32.totalorder %s24, 15
      %p77 = por %p75, %p76
      %p79 = scmp.ne.s32.totalorder %s62, %s78
      %p80 = scmp.eq.s32.totalorder %s24, 0
      %p81 = por %p79, %p80
      %s82 = ssub.s32 %s25, %s51
      %s83 = ssub.s32 %s26, %s47
      %s84 = sor.u32 %s82, %s83
      %s85 = ssub.s32 %s28, %s39
      %s86 = sor.u32 %s84, %s85
      %p87 = scmp.eq.s32.totalorder %s86, 0
      %s89 = sadd.s32 %s88, 1
      %s90 = scalar_select %p87, %s88, %s89
      %p93 = pneg %p87
      %p94 = scmp.eq.s32.totalorder %s18, 15
      %p95 = por %p93, %p94
      %p96 = scmp.ne.s32.totalorder %s88, %s91
      %p97 = scmp.eq.s32.totalorder %s18, 0
      %p98 = por %p96, %p97
      %p99 = scmp.ne.s32.totalorder %s88, %s91
      %p100 = scmp.eq.s32.totalorder %s23, 15
      %p101 = por %p99, %p100
      %p102 = scmp.ne.s32.totalorder %s91, %s92
      %p103 = scmp.eq.s32.totalorder %s23, 0
      %p104 = por %p102, %p103
      %p105 = scmp.ne.s32.totalorder %s91, %s92
      %p106 = scmp.eq.s32.totalorder %s24, 15
      %p107 = por %p105, %p106
      %p109 = scmp.ne.s32.totalorder %s92, %s108
      %p110 = scmp.eq.s32.totalorder %s24, 0
      %p111 = por %p109, %p110
      %s112 = ssub.s32 %s25, %s51
      %s113 = ssub.s32 %s26, %s47
      %s114 = sor.u32 %s112, %s113
      %s115 = ssub.s32 %s28, %s39
      %s116 = sor.u32 %s114, %s115
      %p117 = scmp.eq.s32.totalorder %s116, 0
      %s119 = sadd.s32 %s118, 1
      %s120 = scalar_select %p117, %s118, %s119
      %p123 = pneg %p117
      %p124 = scmp.eq.s32.totalorder %s18, 15
      %p125 = por %p123, %p124
      %p126 = scmp.ne.s32.totalorder %s118, %s121
      %p127 = scmp.eq.s32.totalorder %s18, 0
      %p128 = por %p126, %p127
      %p129 = scmp.ne.s32.totalorder %s118, %s121
      %p130 = scmp.eq.s32.totalorder %s23, 15
      %p131 = por %p129, %p130
      %p132 = scmp.ne.s32.totalorder %s121, %s122
      %p133 = scmp.eq.s32.totalorder %s23, 0
      %p134 = por %p132, %p133
      %p135 = scmp.ne.s32.totalorder %s121, %s122
      %p136 = scmp.eq.s32.totalorder %s24, 15
      %p137 = por %p135, %p136
      %p139 = scmp.ne.s32.totalorder %s122, %s138
      %p140 = scmp.eq.s32.totalorder %s24, 0
      %p141 = por %p139, %p140
      %s142 = ssub.s32 %s25, %s51
      %s143 = ssub.s32 %s27, %s43
      %s144 = sor.u32 %s142, %s143
      %s145 = ssub.s32 %s26, %s47
      %s146 = sor.u32 %s144, %s145
      %p147 = scmp.eq.s32.totalorder %s146, 0
      %s149 = sadd.s32 %s148, 1
      %s150 = scalar_select %p147, %s148, %s149
      %p153 = pneg %p147
      %p154 = scmp.eq.s32.totalorder %s18, 15
      %p155 = por %p153, %p154
      %p156 = scmp.ne.s32.totalorder %s148, %s151
      %p157 = scmp.eq.s32.totalorder %s18, 0
      %p158 = por %p156, %p157
      %p159 = scmp.ne.s32.totalorder %s148, %s151
      %p160 = scmp.eq.s32.totalorder %s23, 15
      %p161 = por %p159, %p160
      %p162 = scmp.ne.s32.totalorder %s151, %s152
      %p163 = scmp.eq.s32.totalorder %s23, 0
      %p164 = por %p162, %p163
      %p165 = scmp.ne.s32.totalorder %s151, %s152
      %p166 = scmp.eq.s32.totalorder %s24, 15
      %p167 = por %p165, %p166
      %p169 = scmp.ne.s32.totalorder %s152, %s168
      %p170 = scmp.eq.s32.totalorder %s24, 0
      %p171 = por %p169, %p170
      %p172 = scmp.le.s32.totalorder 1, %s18
      %p173 = scmp.lt.s32.totalorder %s18, 17
      %p174 = pnand %p172, %p173
      %p175 = pneg %p174
      // Predicated region
      $region9: #{tpu_custom_call.1} parent=5 // pred_check
        _
      $region10: #{tpu_custom_call.1} parent=5 // pred_check_branch
        %177 = sbr.rel (%p174) target = $region12
      $region11: #{tpu_custom_call.1} parent=5 // pred_region
        %s178 = ssub.s32 %s18, 1
      $region12: #{tpu_custom_call.1} parent=5 // pred_fallthru
        _
      %p179 = scmp.lt.s32.totalorder %s18, 16
      // Predicated region
      $region13: #{tpu_custom_call.1} parent=5 // pred_check
        %p180 = pneg %p179
      $region14: #{tpu_custom_call.1} parent=5 // pred_check_branch
        %182 = sbr.rel (%p180) target = $region16
      $region15: #{tpu_custom_call.1} parent=5 // pred_region
        // Predicated region
        $region17: #{tpu_custom_call.1} parent=15 // pred_check
          %p183 = pneg %p68
        $region18: #{tpu_custom_call.1} parent=15 // pred_check_branch
          %185 = sbr.rel (%p183) target = $region20
        $region19: #{tpu_custom_call.1} parent=15 // pred_region
          %s186 = sand.u32 %s58, 1
          %s187 = scalar_lea.sflag [#allocation6], %s186
          %s188 = sand.u32 %s58, 1
          %s189 = smul.addr %s188, 64
          %s190 = scalar_lea.vmem [#allocation5], %s189
          %s191 = smul.u32 8, %s27
          %s193 = ssub.s32 1024, 1024
          %194 = vsyncadd %s187, %s193
          %s195 = smul.addr %s26, 16
          %s196 = sadd.s32 %s191, %s195
          %s197 = smul.addr %s25, 32
          %s198 = sadd.s32 %s196, %s197
          %s199 = smul.addr %s198, 128
          %s200 = scalar_lea.hbm %s0, %s199
          %s201 = sshll.u32 %s190, 4
          %s202 = int_to_ptr.vmem [resolvable:$true] %s201
          %207 = dma.hbm_to_vmem [thread:$0]  %s200, 1024, %s202, %s187, 128, 128, 8
        $region20: #{tpu_custom_call.1} parent=15 // pred_fallthru
          _
        // Predicated region
        $region21: #{tpu_custom_call.1} parent=15 // pred_check
          %p208 = pneg %p98
        $region22: #{tpu_custom_call.1} parent=15 // pred_check_branch
          %210 = sbr.rel (%p208) target = $region24
        $region23: #{tpu_custom_call.1} parent=15 // pred_region
          %s211 = sand.u32 %s18, 1
          %s212 = scalar_lea.sflag [#allocation9], %s211
          %s213 = sand.u32 %s88, 1
          %s214 = smul.addr %s213, 64
          %s215 = scalar_lea.vmem [#allocation8], %s214
          %s216 = smul.u32 8, %s28
          %s218 = ssub.s32 1024, 1024
          %219 = vsyncadd %s212, %s218
          %s220 = smul.addr %s26, 16
          %s221 = sadd.s32 %s216, %s220
          %s222 = smul.addr %s25, 32
          %s223 = sadd.s32 %s221, %s222
          %s224 = smul.addr %s223, 128
          %s225 = scalar_lea.hbm %s1, %s224
          %s226 = sshll.u32 %s215, 4
          %s227 = int_to_ptr.vmem [resolvable:$true] %s226
          %232 = dma.hbm_to_vmem [thread:$0]  %s225, 1024, %s227, %s212, 128, 128, 8
        $region24: #{tpu_custom_call.1} parent=15 // pred_fallthru
          _
        // Predicated region
        $region25: #{tpu_custom_call.1} parent=15 // pred_check
          %p233 = pneg %p128
        $region26: #{tpu_custom_call.1} parent=15 // pred_check_branch
          %235 = sbr.rel (%p233) target = $region28
        $region27: #{tpu_custom_call.1} parent=15 // pred_region
          %s236 = sand.u32 %s18, 1
          %s237 = scalar_lea.sflag [#allocation9], %s236
          %s238 = sand.u32 %s118, 1
          %s239 = smul.addr %s238, 64
          %s240 = scalar_lea.vmem [#allocation10], %s239
          %s241 = smul.u32 8, %s28
          %s243 = ssub.s32 1024, 1024
          %244 = vsyncadd %s237, %s243
          %s245 = smul.addr %s26, 16
          %s246 = sadd.s32 %s241, %s245
          %s247 = smul.addr %s25, 32
          %s248 = sadd.s32 %s246, %s247
          %s249 = smul.addr %s248, 128
          %s250 = scalar_lea.hbm %s2, %s249
          %s251 = sshll.u32 %s240, 4
          %s252 = int_to_ptr.vmem [resolvable:$true] %s251
          %257 = dma.hbm_to_vmem [thread:$0]  %s250, 1024, %s252, %s237, 128, 128, 8
        $region28: #{tpu_custom_call.1} parent=15 // pred_fallthru
          _
      $region16: #{tpu_custom_call.1} parent=5 // pred_fallthru
        _
      %p258 = scmp.le.s32.totalorder 1, %s18
      %p259 = scmp.lt.s32.totalorder %s18, 17
      %p260 = pnand %p258, %p259
      %p261 = pneg %p260
      // Predicated region
      $region29: #{tpu_custom_call.1} parent=5 // pred_check
        _
      $region30: #{tpu_custom_call.1} parent=5 // pred_check_branch
        %263 = sbr.rel (%p260) target = $region32
      $region31: #{tpu_custom_call.1} parent=5 // pred_region
        %s264 = ssub.s32 %s18, 1
        %s265 = sand.u32 %s61, 1
        %s266 = scalar_lea.sflag [#allocation6], %s265
        %s267 = sand.u32 %s61, 1
        %s268 = smul.addr %s267, 64
        %s269 = scalar_lea.vmem [#allocation5], %s268
        // Predicated region
        $region33: #{tpu_custom_call.1} parent=31 // pred_check
          %p270 = pneg %p74
        $region34: #{tpu_custom_call.1} parent=31 // pred_check_branch
          %272 = sbr.rel (%p270) target = $region36
        $region35: #{tpu_custom_call.1} parent=31 // pred_region
          %273 = dma.done %s266, 1024
        $region36: #{tpu_custom_call.1} parent=31 // pred_fallthru
          _
        %s274 = sand.u32 %s23, 1
        %s275 = scalar_lea.sflag [#allocation9], %s274
        %s276 = sand.u32 %s91, 1
        %s277 = smul.addr %s276, 64
        %s278 = scalar_lea.vmem [#allocation8], %s277
        // Predicated region
        $region37: #{tpu_custom_call.1} parent=31 // pred_check
          %p279 = pneg %p104
        $region38: #{tpu_custom_call.1} parent=31 // pred_check_branch
          %281 = sbr.rel (%p279) target = $region40
        $region39: #{tpu_custom_call.1} parent=31 // pred_region
          %282 = dma.done %s275, 1024
        $region40: #{tpu_custom_call.1} parent=31 // pred_fallthru
          _
        %s283 = sand.u32 %s23, 1
        %s284 = scalar_lea.sflag [#allocation9], %s283
        %s285 = sand.u32 %s121, 1
        %s286 = smul.addr %s285, 64
        %s287 = scalar_lea.vmem [#allocation10], %s286
        // Predicated region
        $region41: #{tpu_custom_call.1} parent=31 // pred_check
          %p288 = pneg %p134
        $region42: #{tpu_custom_call.1} parent=31 // pred_check_branch
          %290 = sbr.rel (%p288) target = $region44
        $region43: #{tpu_custom_call.1} parent=31 // pred_region
          %291 = dma.done %s284, 1024
        $region44: #{tpu_custom_call.1} parent=31 // pred_fallthru
          _
        %s292 = sand.u32 %s61, 1
        %s293 = scalar_lea.sflag [#allocation6], %s292
        %s294 = sand.u32 %s61, 1
        %s295 = smul.addr %s294, 64
        %s296 = scalar_lea.vmem [#allocation5], %s295
        %p297 = pneg %p74
        %p298 = pneg %p71
        %s299 = sand.u32 %s23, 1
        %s300 = scalar_lea.sflag [#allocation9], %s299
        %s301 = sand.u32 %s91, 1
        %s302 = smul.addr %s301, 64
        %s303 = scalar_lea.vmem [#allocation8], %s302
        %p304 = pneg %p104
        %p305 = pneg %p101
        %s306 = sand.u32 %s23, 1
        %s307 = scalar_lea.sflag [#allocation9], %s306
        %s308 = sand.u32 %s121, 1
        %s309 = smul.addr %s308, 64
        %s310 = scalar_lea.vmem [#allocation10], %s309
        %p311 = pneg %p134
        %p312 = pneg %p131
        %p313 = pneg %p164
        %p314 = pneg %p161
        %s315 = sand.u32 %s151, 1
        %s316 = scalar_lea.sflag [#allocation7], %s315
        %s317 = sand.u32 %s151, 1
        %s318 = smul.addr %s317, 64
        %s319 = scalar_lea.vmem [#allocation11], %s318
        %s320 = smul.u32 8, %s31
        %s321 = smul.u32 8, %s32
        %s322 = smul.u32 8, %s32
        %s323 = smul.u32 8, %s31
        %p324 = scmp.eq.s32.totalorder %s32, 0
        // Predicated region
        $region45: #{tpu_custom_call.1} parent=31 // pred_check
          %p325 = pneg %p324
        $region46: #{tpu_custom_call.1} parent=31 // pred_check_branch
          %327 = sbr.rel (%p325) target = $region48
        $region47: #{tpu_custom_call.1} parent=31 // pred_region
          %vm328 = vcmask 7168
          %329 = vst.msk [vmem:[#allocation2] sm:$0xff] %vm328, -1e+30
          %330 = vst.msk [vmem:[#allocation2 + $0x8] sm:$0xff] %vm328, -1e+30
          %331 = vst.msk [vmem:[#allocation2 + $0x10] sm:$0xff] %vm328, -1e+30
          %332 = vst.msk [vmem:[#allocation2 + $0x18] sm:$0xff] %vm328, -1e+30
          %333 = vst.msk [vmem:[#allocation2 + $0x20] sm:$0xff] %vm328, -1e+30
          %334 = vst.msk [vmem:[#allocation2 + $0x28] sm:$0xff] %vm328, -1e+30
          %335 = vst.msk [vmem:[#allocation2 + $0x30] sm:$0xff] %vm328, -1e+30
          %336 = vst.msk [vmem:[#allocation2 + $0x38] sm:$0xff] %vm328, -1e+30
          %337 = vst.msk [vmem:[#allocation3] sm:$0xff] %vm328, 0.0
          %338 = vst.msk [vmem:[#allocation3 + $0x8] sm:$0xff] %vm328, 0.0
          %339 = vst.msk [vmem:[#allocation3 + $0x10] sm:$0xff] %vm328, 0.0
          %340 = vst.msk [vmem:[#allocation3 + $0x18] sm:$0xff] %vm328, 0.0
          %341 = vst.msk [vmem:[#allocation3 + $0x20] sm:$0xff] %vm328, 0.0
          %342 = vst.msk [vmem:[#allocation3 + $0x28] sm:$0xff] %vm328, 0.0
          %343 = vst.msk [vmem:[#allocation3 + $0x30] sm:$0xff] %vm328, 0.0
          %344 = vst.msk [vmem:[#allocation3 + $0x38] sm:$0xff] %vm328, 0.0
          %345 = vst [vmem:[#allocation4] sm:$0xff] 0.0
          %346 = vst [vmem:[#allocation4 + $0x8] sm:$0xff] 0.0
          %347 = vst [vmem:[#allocation4 + $0x10] sm:$0xff] 0.0
          %348 = vst [vmem:[#allocation4 + $0x18] sm:$0xff] 0.0
          %349 = vst [vmem:[#allocation4 + $0x20] sm:$0xff] 0.0
          %350 = vst [vmem:[#allocation4 + $0x28] sm:$0xff] 0.0
          %351 = vst [vmem:[#allocation4 + $0x30] sm:$0xff] 0.0
          %352 = vst [vmem:[#allocation4 + $0x38] sm:$0xff] 0.0
        $region48: #{tpu_custom_call.1} parent=31 // pred_fallthru
          _
        %v353 = vld [vmem:[%s269] sm:$0xff]
        %v354 = vld [vmem:[%s269 + $0x8] sm:$0xff]
        %v355 = vld [vmem:[%s269 + $0x10] sm:$0xff]
        %v356 = vld [vmem:[%s269 + $0x18] sm:$0xff]
        %v357 = vld [vmem:[%s269 + $0x20] sm:$0xff]
        %v358 = vld [vmem:[%s269 + $0x28] sm:$0xff]
        %v359 = vld [vmem:[%s269 + $0x30] sm:$0xff]
        %v360 = vld [vmem:[%s269 + $0x38] sm:$0xff]
        %v361 = vld [vmem:[%s278] sm:$0xff]
        %v362 = vld [vmem:[%s278 + $0x8] sm:$0xff]
        %v363 = vld [vmem:[%s278 + $0x10] sm:$0xff]
        %v364 = vld [vmem:[%s278 + $0x18] sm:$0xff]
        %v365 = vld [vmem:[%s278 + $0x20] sm:$0xff]
        %v366 = vld [vmem:[%s278 + $0x28] sm:$0xff]
        %v367 = vld [vmem:[%s278 + $0x30] sm:$0xff]
        %v368 = vld [vmem:[%s278 + $0x38] sm:$0xff]
        %v369 = vld [vmem:[%s287] sm:$0xff]
        %v370 = vld [vmem:[%s287 + $0x8] sm:$0xff]
        %v371 = vld [vmem:[%s287 + $0x10] sm:$0xff]
        %v372 = vld [vmem:[%s287 + $0x18] sm:$0xff]
        %v373 = vld [vmem:[%s287 + $0x20] sm:$0xff]
        %v374 = vld [vmem:[%s287 + $0x28] sm:$0xff]
        %v375 = vld [vmem:[%s287 + $0x30] sm:$0xff]
        %v376 = vld [vmem:[%s287 + $0x38] sm:$0xff]
        %377 = vmatprep.subr.mxu0 0.0
        %378 = vmatpush1.xpose.msra.mxu0 %v361
        %379 = vmatprep.subr.mxu0 0.0
        %380 = vmatpush1.xpose.msra.mxu0 %v362
        %381 = vmatprep.subr.mxu0 0.0
        %382 = vmatpush1.xpose.msra.mxu0 %v363
        %383 = vmatprep.subr.mxu0 0.0
        %384 = vmatpush1.xpose.msra.mxu0 %v364
        %385 = vmatprep.subr.mxu0 0.0
        %386 = vmatpush1.xpose.msra.mxu0 %v365
        %387 = vmatprep.subr.mxu0 0.0
        %388 = vmatpush1.xpose.msra.mxu0 %v366
        %389 = vmatprep.subr.mxu0 0.0
        %390 = vmatpush1.xpose.msra.mxu0 %v367
        %391 = vmatprep.subr.mxu0 0.0
        %392 = vmatpush1.xpose.msra.mxu0 %v368
        %393 = vmatprep.subr.mxu0 0.0
        %394 = vmatpush1.xpose.msra.mxu0 0.0
        %395 = vmatprep.subr.mxu0 0.0
        %396 = vmatpush1.xpose.msra.mxu0 0.0
        %397 = vmatprep.subr.mxu0 0.0
        %398 = vmatpush1.xpose.msra.mxu0 0.0
        %399 = vmatprep.subr.mxu0 0.0
        %400 = vmatpush1.xpose.msra.mxu0 0.0
        %401 = vmatprep.subr.mxu0 0.0
        %402 = vmatpush1.xpose.msra.mxu0 0.0
        %403 = vmatprep.subr.mxu0 0.0
        %404 = vmatpush1.xpose.msra.mxu0 0.0
        %405 = vmatprep.subr.mxu0 0.0
        %406 = vmatpush1.xpose.msra.mxu0 0.0
        %407 = vmatprep.subr.mxu0 0.0
        %408 = vmatpush1.xpose.msra.mxu0 0.0
        %409 = vmatprep.subr.mxu0 0.0
        %410 = vmatpush1.xpose.msra.mxu0 0.0
        %411 = vmatprep.subr.mxu0 0.0
        %412 = vmatpush1.xpose.msra.mxu0 0.0
        %413 = vmatprep.subr.mxu0 0.0
        %414 = vmatpush1.xpose.msra.mxu0 0.0
        %415 = vmatprep.subr.mxu0 0.0
        %416 = vmatpush1.xpose.msra.mxu0 0.0
        %417 = vmatprep.subr.mxu0 0.0
        %418 = vmatpush1.xpose.msra.mxu0 0.0
        %419 = vmatprep.subr.mxu0 0.0
        %420 = vmatpush1.xpose.msra.mxu0 0.0
        %421 = vmatprep.subr.mxu0 0.0
        %422 = vmatpush1.xpose.msra.mxu0 0.0
        %423 = vmatprep.subr.mxu0 0.0
        %424 = vmatpush1.xpose.msra.mxu0 0.0
        %425 = vmatprep.subr.mxu0 0.0
        %426 = vmatpush1.xpose.msra.mxu0 0.0
        %427 = vmatprep.subr.mxu0 0.0
        %428 = vmatpush1.xpose.msra.mxu0 0.0
        %429 = vmatprep.subr.mxu0 0.0
        %430 = vmatpush1.xpose.msra.mxu0 0.0
        %431 = vmatprep.subr.mxu0 0.0
        %432 = vmatpush1.xpose.msra.mxu0 0.0
        %433 = vmatprep.subr.mxu0 0.0
        %434 = vmatpush1.xpose.msra.mxu0 0.0
        %435 = vmatprep.subr.mxu0 0.0
        %436 = vmatpush1.xpose.msra.mxu0 0.0
        %437 = vmatprep.subr.mxu0 0.0
        %438 = vmatpush1.xpose.msra.mxu0 0.0
        %439 = vmatprep.subr.mxu0 0.0
        %440 = vmatpush1.xpose.msra.mxu0 0.0
        %441 = vmatprep.mubr.f32.mxu0 0.0
        %442 = vmatmul.mubr.f32.gmra.mrb[0].mxu0 %v353
        %v443 = vpop.f32.mrb[0].mxu0
        %v444 = vadd.f32 0.0, %v443
        %v445 = vpop.f32.mrb[0].mxu0
        %446 = vmatprep.mubr.f32.mxu0 0.0
        %447 = vmatmul.mubr.f32.gmra.mrb[0].mxu0 %v354
        %v448 = vpop.f32.mrb[0].mxu0
        %v449 = vadd.f32 0.0, %v448
        %v450 = vpop.f32.mrb[0].mxu0
        %451 = vmatprep.mubr.f32.mxu0 0.0
        %452 = vmatmul.mubr.f32.gmra.mrb[0].mxu0 %v355
        %v453 = vpop.f32.mrb[0].mxu0
        %v454 = vadd.f32 0.0, %v453
        %v455 = vpop.f32.mrb[0].mxu0
        %456 = vmatprep.mubr.f32.mxu0 0.0
        %457 = vmatmul.mubr.f32.gmra.mrb[0].mxu0 %v356
        %v458 = vpop.f32.mrb[0].mxu0
        %v459 = vadd.f32 0.0, %v458
        %v460 = vpop.f32.mrb[0].mxu0
        %461 = vmatprep.mubr.f32.mxu0 0.0
        %462 = vmatmul.mubr.f32.gmra.mrb[0].mxu0 %v357
        %v463 = vpop.f32.mrb[0].mxu0
        %v464 = vadd.f32 0.0, %v463
        %v465 = vpop.f32.mrb[0].mxu0
        %466 = vmatprep.mubr.f32.mxu0 0.0
        %467 = vmatmul.mubr.f32.gmra.mrb[0].mxu0 %v358
        %v468 = vpop.f32.mrb[0].mxu0
        %v469 = vadd.f32 0.0, %v468
        %v470 = vpop.f32.mrb[0].mxu0
        %471 = vmatprep.mubr.f32.mxu0 0.0
        %472 = vmatmul.mubr.f32.gmra.mrb[0].mxu0 %v359
        %v473 = vpop.f32.mrb[0].mxu0
        %v474 = vadd.f32 0.0, %v473
        %v475 = vpop.f32.mrb[0].mxu0
        %476 = vmatprep.mubr.f32.mxu0 0.0
        %477 = vmatmul.mubr.f32.gmra.mrb[0].mxu0 %v360
        %v478 = vpop.f32.mrb[0].mxu0
        %v479 = vadd.f32 0.0, %v478
        %v480 = vpop.f32.mrb[0].mxu0
        %481 = vdwg.mxu0
        %v482 = vld [vmem:[#allocation2] sm:$0xff]
        %v483 = vld [vmem:[#allocation2 + $0x8] sm:$0xff]
        %v484 = vld [vmem:[#allocation2 + $0x10] sm:$0xff]
        %v485 = vld [vmem:[#allocation2 + $0x18] sm:$0xff]
        %v486 = vld [vmem:[#allocation2 + $0x20] sm:$0xff]
        %v487 = vld [vmem:[#allocation2 + $0x28] sm:$0xff]
        %v488 = vld [vmem:[#allocation2 + $0x30] sm:$0xff]
        %v489 = vld [vmem:[#allocation2 + $0x38] sm:$0xff]
        %vm490 = vcmask 523264
        %v491 = vsel %vm490, %v444, -inf
        %492 = vmax.xlane.f32.xlu0 %v491
        %v493 = vpop.xlane.xlu0 %492
        %v494 = vsel %vm490, %v449, -inf
        %495 = vmax.xlane.f32.xlu0 %v494
        %v496 = vpop.xlane.xlu0 %495
        %v497 = vsel %vm490, %v454, -inf
        %498 = vmax.xlane.f32.xlu0 %v497
        %v499 = vpop.xlane.xlu0 %498
        %v500 = vsel %vm490, %v459, -inf
        %501 = vmax.xlane.f32.xlu0 %v500
        %v502 = vpop.xlane.xlu0 %501
        %v503 = vsel %vm490, %v464, -inf
        %504 = vmax.xlane.f32.xlu0 %v503
        %v505 = vpop.xlane.xlu0 %504
        %v506 = vsel %vm490, %v469, -inf
        %507 = vmax.xlane.f32.xlu0 %v506
        %v508 = vpop.xlane.xlu0 %507
        %v509 = vsel %vm490, %v474, -inf
        %510 = vmax.xlane.f32.xlu0 %v509
        %v511 = vpop.xlane.xlu0 %510
        %v512 = vsel %vm490, %v479, -inf
        %513 = vmax.xlane.f32.xlu0 %v512
        %v514 = vpop.xlane.xlu0 %513
        %v515 = vmax.f32 %v482, %v493
        %v516 = vmax.f32 %v483, %v496
        %v517 = vmax.f32 %v484, %v499
        %v518 = vmax.f32 %v485, %v502
        %v519 = vmax.f32 %v486, %v505
        %v520 = vmax.f32 %v487, %v508
        %v521 = vmax.f32 %v488, %v511
        %v522 = vmax.f32 %v489, %v514
        %v523 = vsub.f32 %v482, %v515
        %v524 = vsub.f32 %v483, %v516
        %v525 = vsub.f32 %v484, %v517
        %v526 = vsub.f32 %v485, %v518
        %v527 = vsub.f32 %v486, %v519
        %v528 = vsub.f32 %v487, %v520
        %v529 = vsub.f32 %v488, %v521
        %v530 = vsub.f32 %v489, %v522
        %v531 = vmul.f32 %v523, 1.442695
        %v532 = vpow.pop %v531
        %v533 = vmul.f32 %v524, 1.442695
        %v534 = vpow.pop %v533
        %v535 = vmul.f32 %v525, 1.442695
        %v536 = vpow.pop %v535
        %v537 = vmul.f32 %v526, 1.442695
        %v538 = vpow.pop %v537
        %v539 = vmul.f32 %v527, 1.442695
        %v540 = vpow.pop %v539
        %v541 = vmul.f32 %v528, 1.442695
        %v542 = vpow.pop %v541
        %v543 = vmul.f32 %v529, 1.442695
        %v544 = vpow.pop %v543
        %v545 = vmul.f32 %v530, 1.442695
        %v546 = vpow.pop %v545
        %548 = vset.pattern.permute.xlu0 0
        %549 = vperm.xlu0 %548, %v515
        %v550 = vpop.permute.xlu0 %549
        %553 = vset.pattern.permute.xlu0 0
        %554 = vperm.xlu0 %553, %v516
        %v555 = vpop.permute.xlu0 %554
        %558 = vset.pattern.permute.xlu0 0
        %559 = vperm.xlu0 %558, %v517
        %v560 = vpop.permute.xlu0 %559
        %563 = vset.pattern.permute.xlu0 0
        %564 = vperm.xlu0 %563, %v518
        %v565 = vpop.permute.xlu0 %564
        %568 = vset.pattern.permute.xlu0 0
        %569 = vperm.xlu0 %568, %v519
        %v570 = vpop.permute.xlu0 %569
        %573 = vset.pattern.permute.xlu0 0
        %574 = vperm.xlu0 %573, %v520
        %v575 = vpop.permute.xlu0 %574
        %578 = vset.pattern.permute.xlu0 0
        %579 = vperm.xlu0 %578, %v521
        %v580 = vpop.permute.xlu0 %579
        %583 = vset.pattern.permute.xlu0 0
        %584 = vperm.xlu0 %583, %v522
        %v585 = vpop.permute.xlu0 %584
        %v587 = vsub.f32 %v444, %v550
        %v588 = vsub.f32 %v449, %v555
        %v589 = vsub.f32 %v454, %v560
        %v590 = vsub.f32 %v459, %v565
        %v591 = vsub.f32 %v464, %v570
        %v592 = vsub.f32 %v469, %v575
        %v593 = vsub.f32 %v474, %v580
        %v594 = vsub.f32 %v479, %v585
        %v595 = vmul.f32 %v587, 1.442695
        %v596 = vpow.pop %v595
        %v597 = vmul.f32 %v588, 1.442695
        %v598 = vpow.pop %v597
        %v599 = vmul.f32 %v589, 1.442695
        %v600 = vpow.pop %v599
        %v601 = vmul.f32 %v590, 1.442695
        %v602 = vpow.pop %v601
        %v603 = vmul.f32 %v591, 1.442695
        %v604 = vpow.pop %v603
        %v605 = vmul.f32 %v592, 1.442695
        %v606 = vpow.pop %v605
        %v607 = vmul.f32 %v593, 1.442695
        %v608 = vpow.pop %v607
        %v609 = vmul.f32 %v594, 1.442695
        %v610 = vpow.pop %v609
        %v611 = vld [vmem:[#allocation3] sm:$0xff]
        %v612 = vld [vmem:[#allocation3 + $0x8] sm:$0xff]
        %v613 = vld [vmem:[#allocation3 + $0x10] sm:$0xff]
        %v614 = vld [vmem:[#allocation3 + $0x18] sm:$0xff]
        %v615 = vld [vmem:[#allocation3 + $0x20] sm:$0xff]
        %v616 = vld [vmem:[#allocation3 + $0x28] sm:$0xff]
        %v617 = vld [vmem:[#allocation3 + $0x30] sm:$0xff]
        %v618 = vld [vmem:[#allocation3 + $0x38] sm:$0xff]
        %v619 = vmul.f32 %v532, %v611
        %v620 = vmul.f32 %v534, %v612
        %v621 = vmul.f32 %v536, %v613
        %v622 = vmul.f32 %v538, %v614
        %v623 = vmul.f32 %v540, %v615
        %v624 = vmul.f32 %v542, %v616
        %v625 = vmul.f32 %v544, %v617
        %v626 = vmul.f32 %v546, %v618
        %v627 = vsel %vm490, %v596, 0.0
        %628 = vadd.xlane.f32.xlu0 %v627
        %v629 = vpop.xlane.xlu0 %628
        %v630 = vsel %vm490, %v598, 0.0
        %631 = vadd.xlane.f32.xlu0 %v630
        %v632 = vpop.xlane.xlu0 %631
        %v633 = vsel %vm490, %v600, 0.0
        %634 = vadd.xlane.f32.xlu0 %v633
        %v635 = vpop.xlane.xlu0 %634
        %v636 = vsel %vm490, %v602, 0.0
        %637 = vadd.xlane.f32.xlu0 %v636
        %v638 = vpop.xlane.xlu0 %637
        %v639 = vsel %vm490, %v604, 0.0
        %640 = vadd.xlane.f32.xlu0 %v639
        %v641 = vpop.xlane.xlu0 %640
        %v642 = vsel %vm490, %v606, 0.0
        %643 = vadd.xlane.f32.xlu0 %v642
        %v644 = vpop.xlane.xlu0 %643
        %v645 = vsel %vm490, %v608, 0.0
        %646 = vadd.xlane.f32.xlu0 %v645
        %v647 = vpop.xlane.xlu0 %646
        %v648 = vsel %vm490, %v610, 0.0
        %649 = vadd.xlane.f32.xlu0 %v648
        %v650 = vpop.xlane.xlu0 %649
        %v651 = vadd.f32 %v619, %v629
        %v652 = vadd.f32 %v620, %v632
        %v653 = vadd.f32 %v621, %v635
        %v654 = vadd.f32 %v622, %v638
        %v655 = vadd.f32 %v623, %v641
        %v656 = vadd.f32 %v624, %v644
        %v657 = vadd.f32 %v625, %v647
        %v658 = vadd.f32 %v626, %v650
        %vm659 = vcmask 7168
        %660 = vst.msk [vmem:[#allocation3] sm:$0xff] %vm659, %v651
        %661 = vst.msk [vmem:[#allocation3 + $0x8] sm:$0xff] %vm659, %v652
        %662 = vst.msk [vmem:[#allocation3 + $0x10] sm:$0xff] %vm659, %v653
        %663 = vst.msk [vmem:[#allocation3 + $0x18] sm:$0xff] %vm659, %v654
        %664 = vst.msk [vmem:[#allocation3 + $0x20] sm:$0xff] %vm659, %v655
        %665 = vst.msk [vmem:[#allocation3 + $0x28] sm:$0xff] %vm659, %v656
        %666 = vst.msk [vmem:[#allocation3 + $0x30] sm:$0xff] %vm659, %v657
        %667 = vst.msk [vmem:[#allocation3 + $0x38] sm:$0xff] %vm659, %v658
        %v668 = vld [vmem:[#allocation4] sm:$0xff]
        %v669 = vld [vmem:[#allocation4 + $0x8] sm:$0xff]
        %v670 = vld [vmem:[#allocation4 + $0x10] sm:$0xff]
        %v671 = vld [vmem:[#allocation4 + $0x18] sm:$0xff]
        %v672 = vld [vmem:[#allocation4 + $0x20] sm:$0xff]
        %v673 = vld [vmem:[#allocation4 + $0x28] sm:$0xff]
        %v674 = vld [vmem:[#allocation4 + $0x30] sm:$0xff]
        %v675 = vld [vmem:[#allocation4 + $0x38] sm:$0xff]
        %677 = vset.pattern.permute.xlu0 0
        %678 = vperm.xlu0 %677, %v532
        %v679 = vpop.permute.xlu0 %678
        %682 = vset.pattern.permute.xlu0 0
        %683 = vperm.xlu0 %682, %v534
        %v684 = vpop.permute.xlu0 %683
        %687 = vset.pattern.permute.xlu0 0
        %688 = vperm.xlu0 %687, %v536
        %v689 = vpop.permute.xlu0 %688
        %692 = vset.pattern.permute.xlu0 0
        %693 = vperm.xlu0 %692, %v538
        %v694 = vpop.permute.xlu0 %693
        %697 = vset.pattern.permute.xlu0 0
        %698 = vperm.xlu0 %697, %v540
        %v699 = vpop.permute.xlu0 %698
        %702 = vset.pattern.permute.xlu0 0
        %703 = vperm.xlu0 %702, %v542
        %v704 = vpop.permute.xlu0 %703
        %707 = vset.pattern.permute.xlu0 0
        %708 = vperm.xlu0 %707, %v544
        %v709 = vpop.permute.xlu0 %708
        %712 = vset.pattern.permute.xlu0 0
        %713 = vperm.xlu0 %712, %v546
        %v714 = vpop.permute.xlu0 %713
        %v716 = vmul.f32 %v679, %v668
        %v717 = vmul.f32 %v684, %v669
        %v718 = vmul.f32 %v689, %v670
        %v719 = vmul.f32 %v694, %v671
        %v720 = vmul.f32 %v699, %v672
        %v721 = vmul.f32 %v704, %v673
        %v722 = vmul.f32 %v709, %v674
        %v723 = vmul.f32 %v714, %v675
        %v725 = vsel %vm490, %v596, 0
        %v728 = vsel %vm490, %v598, 0
        %v731 = vsel %vm490, %v600, 0
        %v734 = vsel %vm490, %v602, 0
        %v737 = vsel %vm490, %v604, 0
        %v740 = vsel %vm490, %v606, 0
        %v743 = vsel %vm490, %v608, 0
        %v746 = vsel %vm490, %v610, 0
        %748 = vmatprep.subr.mxu0 0.0
        %749 = vmatpush1.msra.mxu0 %v369
        %750 = vmatprep.subr.mxu0 0.0
        %751 = vmatpush1.msra.mxu0 %v370
        %752 = vmatprep.subr.mxu0 0.0
        %753 = vmatpush1.msra.mxu0 %v371
        %754 = vmatprep.subr.mxu0 0.0
        %755 = vmatpush1.msra.mxu0 %v372
        %756 = vmatprep.subr.mxu0 0.0
        %757 = vmatpush1.msra.mxu0 %v373
        %758 = vmatprep.subr.mxu0 0.0
        %759 = vmatpush1.msra.mxu0 %v374
        %760 = vmatprep.subr.mxu0 0.0
        %761 = vmatpush1.msra.mxu0 %v375
        %762 = vmatprep.subr.mxu0 0.0
        %763 = vmatpush1.msra.mxu0 %v376
        %764 = vmatprep.subr.mxu0 0.0
        %765 = vmatpush1.msra.mxu0 0.0
        %766 = vmatprep.subr.mxu0 0.0
        %767 = vmatpush1.msra.mxu0 0.0
        %768 = vmatprep.subr.mxu0 0.0
        %769 = vmatpush1.msra.mxu0 0.0
        %770 = vmatprep.subr.mxu0 0.0
        %771 = vmatpush1.msra.mxu0 0.0
        %772 = vmatprep.subr.mxu0 0.0
        %773 = vmatpush1.msra.mxu0 0.0
        %774 = vmatprep.subr.mxu0 0.0
        %775 = vmatpush1.msra.mxu0 0.0
        %776 = vmatprep.subr.mxu0 0.0
        %777 = vmatpush1.msra.mxu0 0.0
        %778 = vmatprep.subr.mxu0 0.0
        %779 = vmatpush1.msra.mxu0 0.0
        %780 = vmatprep.subr.mxu0 0.0
        %781 = vmatpush1.msra.mxu0 0.0
        %782 = vmatprep.subr.mxu0 0.0
        %783 = vmatpush1.msra.mxu0 0.0
        %784 = vmatprep.subr.mxu0 0.0
        %785 = vmatpush1.msra.mxu0 0.0
        %786 = vmatprep.subr.mxu0 0.0
        %787 = vmatpush1.msra.mxu0 0.0
        %788 = vmatprep.subr.mxu0 0.0
        %789 = vmatpush1.msra.mxu0 0.0
        %790 = vmatprep.subr.mxu0 0.0
        %791 = vmatpush1.msra.mxu0 0.0
        %792 = vmatprep.subr.mxu0 0.0
        %793 = vmatpush1.msra.mxu0 0.0
        %794 = vmatprep.subr.mxu0 0.0
        %795 = vmatpush1.msra.mxu0 0.0
        %796 = vmatprep.subr.mxu0 0.0
        %797 = vmatpush1.msra.mxu0 0.0
        %798 = vmatprep.subr.mxu0 0.0
        %799 = vmatpush1.msra.mxu0 0.0
        %800 = vmatprep.subr.mxu0 0.0
        %801 = vmatpush1.msra.mxu0 0.0
        %802 = vmatprep.subr.mxu0 0.0
        %803 = vmatpush1.msra.mxu0 0.0
        %804 = vmatprep.subr.mxu0 0.0
        %805 = vmatpush1.msra.mxu0 0.0
        %806 = vmatprep.subr.mxu0 0.0
        %807 = vmatpush1.msra.mxu0 0.0
        %808 = vmatprep.subr.mxu0 0.0
        %809 = vmatpush1.msra.mxu0 0.0
        %810 = vmatprep.subr.mxu0 0.0
        %811 = vmatpush1.msra.mxu0 0.0
        %812 = vmatprep.mubr.f32.mxu0 0.0
        %813 = vmatmul.mubr.f32.gmra.mrb[0].mxu0 %v725
        %v814 = vpop.f32.mrb[0].mxu0
        %v815 = vadd.f32 0.0, %v814
        %v816 = vpop.f32.mrb[0].mxu0
        %817 = vmatprep.mubr.f32.mxu0 0.0
        %818 = vmatmul.mubr.f32.gmra.mrb[0].mxu0 %v728
        %v819 = vpop.f32.mrb[0].mxu0
        %v820 = vadd.f32 0.0, %v819
        %v821 = vpop.f32.mrb[0].mxu0
        %822 = vmatprep.mubr.f32.mxu0 0.0
        %823 = vmatmul.mubr.f32.gmra.mrb[0].mxu0 %v731
        %v824 = vpop.f32.mrb[0].mxu0
        %v825 = vadd.f32 0.0, %v824
        %v826 = vpop.f32.mrb[0].mxu0
        %827 = vmatprep.mubr.f32.mxu0 0.0
        %828 = vmatmul.mubr.f32.gmra.mrb[0].mxu0 %v734
        %v829 = vpop.f32.mrb[0].mxu0
        %v830 = vadd.f32 0.0, %v829
        %v831 = vpop.f32.mrb[0].mxu0
        %832 = vmatprep.mubr.f32.mxu0 0.0
        %833 = vmatmul.mubr.f32.gmra.mrb[0].mxu0 %v737
        %v834 = vpop.f32.mrb[0].mxu0
        %v835 = vadd.f32 0.0, %v834
        %v836 = vpop.f32.mrb[0].mxu0
        %837 = vmatprep.mubr.f32.mxu0 0.0
        %838 = vmatmul.mubr.f32.gmra.mrb[0].mxu0 %v740
        %v839 = vpop.f32.mrb[0].mxu0
        %v840 = vadd.f32 0.0, %v839
        %v841 = vpop.f32.mrb[0].mxu0
        %842 = vmatprep.mubr.f32.mxu0 0.0
        %843 = vmatmul.mubr.f32.gmra.mrb[0].mxu0 %v743
        %v844 = vpop.f32.mrb[0].mxu0
        %v845 = vadd.f32 0.0, %v844
        %v846 = vpop.f32.mrb[0].mxu0
        %847 = vmatprep.mubr.f32.mxu0 0.0
        %848 = vmatmul.mubr.f32.gmra.mrb[0].mxu0 %v746
        %v849 = vpop.f32.mrb[0].mxu0
        %v850 = vadd.f32 0.0, %v849
        %v851 = vpop.f32.mrb[0].mxu0
        %852 = vdwg.mxu0
        %v853 = vadd.f32 %v716, %v815
        %v854 = vadd.f32 %v717, %v820
        %v855 = vadd.f32 %v718, %v825
        %v856 = vadd.f32 %v719, %v830
        %v857 = vadd.f32 %v720, %v835
        %v858 = vadd.f32 %v721, %v840
        %v859 = vadd.f32 %v722, %v845
        %v860 = vadd.f32 %v723, %v850
        %861 = vst [vmem:[#allocation4] sm:$0xff] %v853
        %862 = vst [vmem:[#allocation4 + $0x8] sm:$0xff] %v854
        %863 = vst [vmem:[#allocation4 + $0x10] sm:$0xff] %v855
        %864 = vst [vmem:[#allocation4 + $0x18] sm:$0xff] %v856
        %865 = vst [vmem:[#allocation4 + $0x20] sm:$0xff] %v857
        %866 = vst [vmem:[#allocation4 + $0x28] sm:$0xff] %v858
        %867 = vst [vmem:[#allocation4 + $0x30] sm:$0xff] %v859
        %868 = vst [vmem:[#allocation4 + $0x38] sm:$0xff] %v860
        %869 = vst.msk [vmem:[#allocation2] sm:$0xff] %vm659, %v515
        %870 = vst.msk [vmem:[#allocation2 + $0x8] sm:$0xff] %vm659, %v516
        %871 = vst.msk [vmem:[#allocation2 + $0x10] sm:$0xff] %vm659, %v517
        %872 = vst.msk [vmem:[#allocation2 + $0x18] sm:$0xff] %vm659, %v518
        %873 = vst.msk [vmem:[#allocation2 + $0x20] sm:$0xff] %vm659, %v519
        %874 = vst.msk [vmem:[#allocation2 + $0x28] sm:$0xff] %vm659, %v520
        %875 = vst.msk [vmem:[#allocation2 + $0x30] sm:$0xff] %vm659, %v521
        %876 = vst.msk [vmem:[#allocation2 + $0x38] sm:$0xff] %vm659, %v522
        %p877 = scmp.eq.s32.totalorder %s32, 1
        // Predicated region
        $region49: #{tpu_custom_call.1} parent=31 // pred_check
          %p878 = pneg %p877
        $region50: #{tpu_custom_call.1} parent=31 // pred_check_branch
          %880 = sbr.rel (%p878) target = $region52
        $region51: #{tpu_custom_call.1} parent=31 // pred_region
          %v881 = vld [vmem:[#allocation3] sm:$0xff]
          %v882 = vld [vmem:[#allocation3 + $0x8] sm:$0xff]
          %v883 = vld [vmem:[#allocation3 + $0x10] sm:$0xff]
          %v884 = vld [vmem:[#allocation3 + $0x18] sm:$0xff]
          %v885 = vld [vmem:[#allocation3 + $0x20] sm:$0xff]
          %v886 = vld [vmem:[#allocation3 + $0x28] sm:$0xff]
          %v887 = vld [vmem:[#allocation3 + $0x30] sm:$0xff]
          %v888 = vld [vmem:[#allocation3 + $0x38] sm:$0xff]
          %v889 = vrcp.pop %v881
          %v890 = vrcp.pop %v882
          %v891 = vrcp.pop %v883
          %v892 = vrcp.pop %v884
          %v893 = vrcp.pop %v885
          %v894 = vrcp.pop %v886
          %v895 = vrcp.pop %v887
          %v896 = vrcp.pop %v888
          %v897 = vld [vmem:[#allocation4] sm:$0xff]
          %v898 = vld [vmem:[#allocation4 + $0x8] sm:$0xff]
          %v899 = vld [vmem:[#allocation4 + $0x10] sm:$0xff]
          %v900 = vld [vmem:[#allocation4 + $0x18] sm:$0xff]
          %v901 = vld [vmem:[#allocation4 + $0x20] sm:$0xff]
          %v902 = vld [vmem:[#allocation4 + $0x28] sm:$0xff]
          %v903 = vld [vmem:[#allocation4 + $0x30] sm:$0xff]
          %v904 = vld [vmem:[#allocation4 + $0x38] sm:$0xff]
          %906 = vset.pattern.permute.xlu0 0
          %907 = vperm.xlu0 %906, %v889
          %v908 = vpop.permute.xlu0 %907
          %911 = vset.pattern.permute.xlu0 0
          %912 = vperm.xlu0 %911, %v890
          %v913 = vpop.permute.xlu0 %912
          %916 = vset.pattern.permute.xlu0 0
          %917 = vperm.xlu0 %916, %v891
          %v918 = vpop.permute.xlu0 %917
          %921 = vset.pattern.permute.xlu0 0
          %922 = vperm.xlu0 %921, %v892
          %v923 = vpop.permute.xlu0 %922
          %926 = vset.pattern.permute.xlu0 0
          %927 = vperm.xlu0 %926, %v893
          %v928 = vpop.permute.xlu0 %927
          %931 = vset.pattern.permute.xlu0 0
          %932 = vperm.xlu0 %931, %v894
          %v933 = vpop.permute.xlu0 %932
          %936 = vset.pattern.permute.xlu0 0
          %937 = vperm.xlu0 %936, %v895
          %v938 = vpop.permute.xlu0 %937
          %941 = vset.pattern.permute.xlu0 0
          %942 = vperm.xlu0 %941, %v896
          %v943 = vpop.permute.xlu0 %942
          %v945 = vmul.f32 %v897, %v908
          %v946 = vmul.f32 %v898, %v913
          %v947 = vmul.f32 %v899, %v918
          %v948 = vmul.f32 %v900, %v923
          %v949 = vmul.f32 %v901, %v928
          %v950 = vmul.f32 %v902, %v933
          %v951 = vmul.f32 %v903, %v938
          %v952 = vmul.f32 %v904, %v943
          %953 = vst [vmem:[%s319] sm:$0xff] %v945
          %954 = vst [vmem:[%s319 + $0x8] sm:$0xff] %v946
          %955 = vst [vmem:[%s319 + $0x10] sm:$0xff] %v947
          %956 = vst [vmem:[%s319 + $0x18] sm:$0xff] %v948
          %957 = vst [vmem:[%s319 + $0x20] sm:$0xff] %v949
          %958 = vst [vmem:[%s319 + $0x28] sm:$0xff] %v950
          %959 = vst [vmem:[%s319 + $0x30] sm:$0xff] %v951
          %960 = vst [vmem:[%s319 + $0x38] sm:$0xff] %v952
        $region52: #{tpu_custom_call.1} parent=31 // pred_fallthru
          _
        %s961 = sand.u32 %s151, 1
        %s962 = scalar_lea.sflag [#allocation7], %s961
        %s963 = sand.u32 %s151, 1
        %s964 = smul.addr %s963, 64
        %s965 = scalar_lea.vmem [#allocation11], %s964
        // Predicated region
        $region53: #{tpu_custom_call.1} parent=31 // pred_check
          %p966 = pneg %p161
        $region54: #{tpu_custom_call.1} parent=31 // pred_check_branch
          %968 = sbr.rel (%p966) target = $region56
        $region55: #{tpu_custom_call.1} parent=31 // pred_region
          %s969 = smul.u32 8, %s31
          %s971 = ssub.s32 1024, 1024
          %972 = vsyncadd %s962, %s971
          %s973 = smul.addr %s969, 2
          %s974 = sadd.s32 %s30, %s973
          %s975 = smul.addr %s29, 32
          %s976 = sadd.s32 %s974, %s975
          %s977 = smul.addr %s976, 128
          %s978 = scalar_lea.hbm %s3, %s977
          %s979 = sshll.u32 %s965, 4
          %s980 = int_to_ptr.vmem [resolvable:$true] %s979
          %985 = dma.vmem_to_hbm [thread:$0]  %s980, 1024, %s978, %s962, 128, 256, 8
        $region56: #{tpu_custom_call.1} parent=31 // pred_fallthru
          _
      $region32: #{tpu_custom_call.1} parent=5 // pred_fallthru
        _
      %p986 = scmp.le.s32.totalorder 2, %s18
      // Predicated region
      $region57: #{tpu_custom_call.1} parent=5 // pred_check
        %p987 = pneg %p986
      $region58: #{tpu_custom_call.1} parent=5 // pred_check_branch
        %989 = sbr.rel (%p987) target = $region60
      $region59: #{tpu_custom_call.1} parent=5 // pred_region
        %s990 = ssub.s32 %s18, 2
        // Predicated region
        $region61: #{tpu_custom_call.1} parent=59 // pred_check
          %p991 = pneg %p167
        $region62: #{tpu_custom_call.1} parent=59 // pred_check_branch
          %993 = sbr.rel (%p991) target = $region64
        $region63: #{tpu_custom_call.1} parent=59 // pred_region
          %s994 = sand.u32 %s152, 1
          %s995 = scalar_lea.sflag [#allocation7], %s994
          %s996 = sand.u32 %s152, 1
          %s997 = smul.addr %s996, 64
          %s998 = scalar_lea.vmem [#allocation11], %s997
          %999 = dma.done %s995, 1024
        $region64: #{tpu_custom_call.1} parent=59 // pred_fallthru
          _
      $region60: #{tpu_custom_call.1} parent=5 // pred_fallthru
        _
    $region6: #{tpu_custom_call.1} parent=1 // loop_footer
      %s22 = sadd.s32 1, %s18
    $region7: #{tpu_custom_call.1} parent=1 // loop_footer_branch
      %17 = sbr.rel target = $region3
    $region8: #{tpu_custom_call.1} parent=1 // loop_exit
      _
    %1000 = vsyncpa [#allocation6], 1
    %s1001 = scalar_lea.sflag [#allocation6], 1
    %1002 = vsyncpa %s1001, 1
    %1003 = vsyncpa [#allocation9], 1
    %s1004 = scalar_lea.sflag [#allocation9], 1
    %1005 = vsyncpa %s1004, 1
    %1006 = vsyncpa [#allocation7], 1
    %s1007 = scalar_lea.sflag [#allocation7], 1
    %1008 = vsyncpa %s1007, 1

</llo_original>
